<compile_context>
chip_gen: v7x
topology: tpu7x:2x2x1
jax: 0.10.0
libtpu: 0.0.40
codegen_flags: <defaults>
</compile_context>

<pallas_src>
import functools

import jax
import jax.numpy as jnp
from jax.experimental import pallas as pl
from jax.experimental.pallas import tpu as pltpu

_IGNORE_INDEX = -100          # F.cross_entropy default; also the label pad value
_LANE = 128
_SUBLANE = 8


def _round_up(x, m):
    return -(-x // m) * m


def _vmem_plan():
    """Per-generation (scoped-VMEM request, per-input-block VMEM byte budget)."""
    try:
        info = pltpu.get_tpu_info()
        phys = int(getattr(info, "vmem_capacity_bytes", 128 * 1024 * 1024))
    except Exception:  # pragma: no cover - conservative default
        phys = 128 * 1024 * 1024
    # 64 MiB on v5e/v6e (128 MiB physical), 32 MiB on v7x (64 MiB physical).
    vmem_limit = min(phys // 2, 64 * 1024 * 1024)
    # One input block is double buffered and the kernel holds a few f32-sized
    # temporaries of the same footprint -> keep a block at ~1/6 of the request.
    block_budget = vmem_limit // 6
    return vmem_limit, block_budget


def _ce_kernel(pred_ref, label_ref, weight_ref, out_ref, *,
               class_axis, transpose_pred, apply_label_weight_map):
    """Per-sample weighted softmax cross entropy for one tile.

    transpose_pred=True : pred block is (tn, C), transposed in-kernel to (C, tn);
                          label/weight/out blocks are (1, tn)  (lane-dense).
    transpose_pred=False: pred block is (tn, C); label/weight/out are (tn, 1).
    """
    pred = pred_ref[...].astype(jnp.float32)
    if transpose_pred:
        pred = jnp.transpose(pred)            # (C, tn): samples on lanes (XLU)
    label = label_ref[...]
    w = weight_ref[...]

    if apply_label_weight_map:                # static (N < 2000), mirrors torch
        w = jnp.where(label == 1, 1.0, w)
        w = jnp.where(label == 2, 3.0, w)
        w = jnp.where(label == 3, 1.0, w)
        w = jnp.where(label == 4, 3.0, w)
        w = jnp.where((label >= 5) & (label <= 9), 5.0, w)

    # Numerically stable CE: loss = log(sum(exp(pred - m))) - (pred[label] - m).
    m = jnp.max(pred, axis=class_axis, keepdims=True)
    shifted = pred - m                                    # reused by both passes
    sum_e = jnp.sum(jnp.exp(shifted), axis=class_axis, keepdims=True)
    num_classes = pred.shape[class_axis]
    iota_shape = (num_classes, 1) if class_axis == 0 else (1, num_classes)
    cls_idx = jax.lax.broadcasted_iota(jnp.int32, iota_shape, class_axis)
    picked = jnp.sum(jnp.where(cls_idx == label, shifted, 0.0),
                     axis=class_axis, keepdims=True)
    per = (jnp.log(sum_e) - picked) * w
    # Select (not multiply): padded / ignore_index rows are exactly zero even if
    # the (unread-from-HBM) boundary rows of the last logits block hold garbage.
    out_ref[...] = jnp.where(label == _IGNORE_INDEX, 0.0, per)


def _plan_steps(N, tn_cap, tn_full, granule, hbm_bytes):
    """Balanced tile rows and step count (no padded logits, partial last block)."""
    steps = pl.cdiv(N, min(tn_cap, tn_full))
    # Keep >=4 steps when each step still moves >=~1 MiB so both v7x TCs get work.
    steps = max(steps, min(4, hbm_bytes // (1024 * 1024)), 1)
    tn = min(_round_up(pl.cdiv(N, steps), granule), tn_full, tn_cap)
    steps = pl.cdiv(N, tn)
    return tn, steps


def _run_lane_dense(cls_score, label, weight, apply_map, vmem_limit, block_budget):
    """C < 128, N >= 128: (tn, C) blocks, in-kernel transpose, (1, tn) output."""
    N, C = cls_score.shape
    itemsize = jnp.dtype(cls_score.dtype).itemsize
    # A (tn, C<128) block occupies tn * 128 * itemsize bytes of VMEM (lane pad).
    tn_cap = max(_LANE, (block_budget // (_LANE * itemsize)) // _LANE * _LANE)
    tn_full = (N // _LANE) * _LANE
    tn, steps = _plan_steps(N, tn_cap, tn_full, _LANE, N * C * itemsize)
    n_pad = steps * tn

    # Only the tiny label/weight vectors are padded (N*4 bytes each, negligible).
    lab = jnp.pad(label, (0, n_pad - N),
                  constant_values=_IGNORE_INDEX).reshape(1, n_pad)
    wgt = jnp.pad(weight, (0, n_pad - N)).reshape(1, n_pad)

    kernel = functools.partial(_ce_kernel, class_axis=0, transpose_pred=True,
                               apply_label_weight_map=apply_map)
    per = pl.pallas_call(
        kernel,
        out_shape=jax.ShapeDtypeStruct((1, n_pad), jnp.float32),
        grid_spec=pltpu.PrefetchScalarGridSpec(
            num_scalar_prefetch=0,
            grid=(steps,),
            in_specs=[
                pl.BlockSpec((tn, C), lambda i: (i, 0)),   # logits rows (no pad)
                pl.BlockSpec((1, tn), lambda i: (0, i)),   # labels
                pl.BlockSpec((1, tn), lambda i: (0, i)),   # weights
            ],
            out_specs=pl.BlockSpec((1, tn), lambda i: (0, i)),  # lane-dense out
        ),
        compiler_params=pltpu.CompilerParams(
            dimension_semantics=("parallel",), vmem_limit_bytes=vmem_limit),
    )(cls_score, lab, wgt)
    return per[0, :N]


def _run_row_major(cls_score, label, weight, apply_map, vmem_limit, block_budget):
    """Wide C (>=128) or tiny N: (tn, C) blocks, axis=-1 reductions."""
    N, C = cls_score.shape
    itemsize = jnp.dtype(cls_score.dtype).itemsize
    c_pad = _round_up(C, _LANE)               # lane padding of C in VMEM
    # TODO(synk): for extremely wide C (LLM-style vocab) a class-chunked
    # online-softmax variant (grid axis over C marked "arbitrary", scratch-carried
    # m / sum_e / picked) would be needed; the 8-row floor below can exceed the
    # VMEM budget in that regime.
    tn_cap = max(_SUBLANE, (block_budget // (c_pad * itemsize)) // _SUBLANE * _SUBLANE)

    if N <= _SUBLANE:
        tn, steps = N, 1                      # single exact block == full array
    else:
        tn_full = (N // _SUBLANE) * _SUBLANE
        tn, steps = _plan_steps(N, tn_cap, tn_full, _SUBLANE, N * C * itemsize)
    n_pad = steps * tn

    lab = jnp.pad(label, (0, n_pad - N),
                  constant_values=_IGNORE_INDEX).reshape(n_pad, 1)
    wgt = jnp.pad(weight, (0, n_pad - N)).reshape(n_pad, 1)

    kernel = functools.partial(_ce_kernel, class_axis=1, transpose_pred=False,
                               apply_label_weight_map=apply_map)
    per = pl.pallas_call(
        kernel,
        out_shape=jax.ShapeDtypeStruct((n_pad, 1), jnp.float32),
        grid_spec=pltpu.PrefetchScalarGridSpec(
            num_scalar_prefetch=0,
            grid=(steps,),
            in_specs=[
                pl.BlockSpec((tn, C), lambda i: (i, 0)),   # logits rows (no pad)
                pl.BlockSpec((tn, 1), lambda i: (i, 0)),   # labels
                pl.BlockSpec((tn, 1), lambda i: (i, 0)),   # weights
            ],
            out_specs=pl.BlockSpec((tn, 1), lambda i: (i, 0)),
        ),
        compiler_params=pltpu.CompilerParams(
            dimension_semantics=("parallel",), vmem_limit_bytes=vmem_limit),
    )(cls_score, lab, wgt)
    return per[:N, 0]


def _per_sample_losses(cls_score, label, weight, apply_map):
    """(N,) float32 vector of weight * CE(pred, label); ignore_index rows are 0."""
    N, C = cls_score.shape
    label = label.reshape(N).astype(jnp.int32)
    weight = weight.reshape(N).astype(jnp.float32)
    vmem_limit, block_budget = _vmem_plan()

    if C < _LANE and N >= _LANE:
        try:
            return _run_lane_dense(cls_score, label, weight, apply_map,
                                   vmem_limit, block_budget)
        except Exception:
            # TODO(synk): in-kernel (tn,C)->(C,tn) transpose not supported by
            # this Mosaic toolchain; fall back to the row-major layout.
            pass
    return _run_row_major(cls_score, label, weight, apply_map,
                          vmem_limit, block_budget)


def cross_entropy_loss(cls_score, label, weight=None, *, loss_weight=1.0,
                       reduction='mean', avg_factor=None):
    """Pallas implementation of mmdet CrossEntropyLoss.forward
    (use_sigmoid=False, use_mask=False)."""
    # TODO(synk): the use_sigmoid (binary_cross_entropy) and use_mask
    # (mask_cross_entropy) branches of the module are not implemented here.
    assert reduction in ('none', 'mean', 'sum')
    N, _ = cls_score.shape
    if weight is None:
        weight = jnp.ones((N,), jnp.float32)
    apply_map = N < 2000          # static shape check, mirrors the torch code
    per_sample = _per_sample_losses(cls_score, label, weight, apply_map)

    if reduction == 'none':
        return loss_weight * per_sample
    total = jnp.sum(per_sample)
    if avg_factor is None:
        if reduction == 'sum':
            return loss_weight * total
        return loss_weight * total / N
    if reduction == 'mean':
        return loss_weight * total / avg_factor
    raise ValueError('avg_factor can not be used with reduction="sum"')


def _reference(cls_score, label, weight, loss_weight=1.0):
    """Plain-JAX replica of the torch module (mean reduction)."""
    w = weight.astype(jnp.float32)
    if cls_score.shape[0] < 2000:
        w = jnp.where(label == 1, 1.0, w)
        w = jnp.where(label == 2, 3.0, w)
        w = jnp.where(label == 3, 1.0, w)
        w = jnp.where(label == 4, 3.0, w)
        w = jnp.where((label >= 5) & (label <= 9), 5.0, w)
    logp = jax.nn.log_softmax(cls_score.astype(jnp.float32), axis=-1)
    per = -jnp.take_along_axis(logp, label[:, None].astype(jnp.int32), axis=-1)[:, 0]
    return loss_weight * jnp.mean(per * w)


if __name__ == "__main__":
    key = jax.random.PRNGKey(0)

    def _check(N, C, num_fg, case_key, dtype=jnp.float32):
        k1, k2, k3 = jax.random.split(case_key, 3)
        cls_score = jax.random.normal(k1, (N, C), dtype=jnp.float32).astype(dtype)
        label = jax.random.randint(k2, (N,), 0, num_fg, dtype=jnp.int32)
        weight = jax.random.uniform(k3, (N,), dtype=jnp.float32)
        loss = jax.block_until_ready(
            cross_entropy_loss(cls_score, label, weight, loss_weight=1.0))
        ref = _reference(cls_score.astype(jnp.float32), label, weight)
        assert jnp.allclose(loss, ref, rtol=1e-4, atol=1e-5), (N, C, loss, ref)

    # Tiny N (single exact block, row-major path), labels 0..9 like the mmdet head.
    _check(64, 16, 10, jax.random.fold_in(key, 0))
    # Ragged N (partial last logits block + ignore-index masking).
    _check(50, 16, 10, jax.random.fold_in(key, 1))
    # Wide class count (row-major path, lane-padded C budget).
    _check(24, 130, 130, jax.random.fold_in(key, 2))
    # Lane-dense small-C path (in-kernel transpose), ragged N.
    _check(1000, 16, 10, jax.random.fold_in(key, 3))
    # N >= 2000: label->weight map disabled branch.
    _check(2080, 10, 10, jax.random.fold_in(key, 4))
    # bf16 logits from the producer (kernel accumulates in f32).
    _check(1000, 16, 10, jax.random.fold_in(key, 5), dtype=jnp.bfloat16)

    print("KERNEL_OK")
</pallas_src>

<mosaic_0001>
module attributes {stable_mosaic.version = 11 : i64} {
  func.func @_ce_kernel(%arg0: i32, %arg1: memref<64x16xf32, #tpu.memory_space<vmem>>, %arg2: memref<64x1xi32, #tpu.memory_space<vmem>>, %arg3: memref<64x1xf32, #tpu.memory_space<vmem>>, %arg4: memref<64x1xf32, #tpu.memory_space<vmem>>) attributes {dimension_semantics = [#tpu.dimension_semantics<parallel>], iteration_bounds = array<i64: 1>, scalar_prefetch = 0 : i64, scratch_operands = 0 : i64, tpu.core_type = #tpu.core_type<tc>, window_params = [{transform_indices = @transform_0, window_bounds = array<i64: 64, 16>}, {transform_indices = @transform_1, window_bounds = array<i64: 64, 1>}, {transform_indices = @transform_2, window_bounds = array<i64: 64, 1>}, {transform_indices = @transform_3, window_bounds = array<i64: 64, 1>}]} {
    %c0 = arith.constant 0 : index
    %c0_0 = arith.constant 0 : index
    %0 = vector.load %arg1[%c0, %c0_0] : memref<64x16xf32, #tpu.memory_space<vmem>>, vector<64x16xf32>
    %c0_1 = arith.constant 0 : index
    %c0_2 = arith.constant 0 : index
    %1 = vector.load %arg2[%c0_1, %c0_2] : memref<64x1xi32, #tpu.memory_space<vmem>>, vector<64x1xi32>
    %c0_3 = arith.constant 0 : index
    %c0_4 = arith.constant 0 : index
    %2 = vector.load %arg3[%c0_3, %c0_4] : memref<64x1xf32, #tpu.memory_space<vmem>>, vector<64x1xf32>
    %c1_i32 = arith.constant 1 : i32
    %3 = vector.broadcast %c1_i32 : i32 to vector<64x1xi32>
    %4 = arith.cmpi eq, %1, %3 : vector<64x1xi32>
    %cst = arith.constant 1.000000e+00 : f32
    %5 = vector.broadcast %cst : f32 to vector<64x1xf32>
    %6 = arith.select %4, %5, %2 : vector<64x1xi1>, vector<64x1xf32>
    %c2_i32 = arith.constant 2 : i32
    %7 = vector.broadcast %c2_i32 : i32 to vector<64x1xi32>
    %8 = arith.cmpi eq, %1, %7 : vector<64x1xi32>
    %cst_5 = arith.constant 3.000000e+00 : f32
    %9 = vector.broadcast %cst_5 : f32 to vector<64x1xf32>
    %10 = arith.select %8, %9, %6 : vector<64x1xi1>, vector<64x1xf32>
    %c3_i32 = arith.constant 3 : i32
    %11 = vector.broadcast %c3_i32 : i32 to vector<64x1xi32>
    %12 = arith.cmpi eq, %1, %11 : vector<64x1xi32>
    %cst_6 = arith.constant 1.000000e+00 : f32
    %13 = vector.broadcast %cst_6 : f32 to vector<64x1xf32>
    %14 = arith.select %12, %13, %10 : vector<64x1xi1>, vector<64x1xf32>
    %c4_i32 = arith.constant 4 : i32
    %15 = vector.broadcast %c4_i32 : i32 to vector<64x1xi32>
    %16 = arith.cmpi eq, %1, %15 : vector<64x1xi32>
    %cst_7 = arith.constant 3.000000e+00 : f32
    %17 = vector.broadcast %cst_7 : f32 to vector<64x1xf32>
    %18 = arith.select %16, %17, %14 : vector<64x1xi1>, vector<64x1xf32>
    %c5_i32 = arith.constant 5 : i32
    %19 = vector.broadcast %c5_i32 : i32 to vector<64x1xi32>
    %20 = arith.cmpi sge, %1, %19 : vector<64x1xi32>
    %c9_i32 = arith.constant 9 : i32
    %21 = vector.broadcast %c9_i32 : i32 to vector<64x1xi32>
    %22 = arith.cmpi sle, %1, %21 : vector<64x1xi32>
    %23 = arith.andi %20, %22 : vector<64x1xi1>
    %cst_8 = arith.constant 5.000000e+00 : f32
    %24 = vector.broadcast %cst_8 : f32 to vector<64x1xf32>
    %25 = arith.select %23, %24, %18 : vector<64x1xi1>, vector<64x1xf32>
    %cst_9 = arith.constant dense<0xFF800000> : vector<64xf32>
    %26 = vector.multi_reduction <maximumf>, %0, %cst_9 [1] : vector<64x16xf32> to vector<64xf32>
    %27 = vector.shape_cast %26 : vector<64xf32> to vector<64x1xf32>
    %28 = vector.broadcast %27 : vector<64x1xf32> to vector<64x16xf32>
    %29 = arith.subf %0, %28 : vector<64x16xf32>
    %30 = math.exp %29 : vector<64x16xf32>
    %cst_10 = arith.constant dense<0.000000e+00> : vector<64xf32>
    %31 = vector.multi_reduction <add>, %30, %cst_10 [1] : vector<64x16xf32> to vector<64xf32>
    %32 = vector.shape_cast %31 : vector<64xf32> to vector<64x1xf32>
    %33 = tpu.iota {dimensions = array<i32: 1>} : vector<1x16xi32>
    %34 = vector.broadcast %33 : vector<1x16xi32> to vector<64x16xi32>
    %35 = vector.broadcast %1 : vector<64x1xi32> to vector<64x16xi32>
    %36 = arith.cmpi eq, %34, %35 : vector<64x16xi32>
    %cst_11 = arith.constant 0.000000e+00 : f32
    %37 = vector.broadcast %cst_11 : f32 to vector<64x16xf32>
    %38 = arith.select %36, %29, %37 : vector<64x16xi1>, vector<64x16xf32>
    %cst_12 = arith.constant dense<0.000000e+00> : vector<64xf32>
    %39 = vector.multi_reduction <add>, %38, %cst_12 [1] : vector<64x16xf32> to vector<64xf32>
    %40 = vector.shape_cast %39 : vector<64xf32> to vector<64x1xf32>
    %41 = math.log %32 : vector<64x1xf32>
    %42 = arith.subf %41, %40 : vector<64x1xf32>
    %43 = arith.mulf %42, %25 : vector<64x1xf32>
    %c-100_i32 = arith.constant -100 : i32
    %44 = vector.broadcast %c-100_i32 : i32 to vector<64x1xi32>
    %45 = arith.cmpi eq, %1, %44 : vector<64x1xi32>
    %cst_13 = arith.constant 0.000000e+00 : f32
    %46 = vector.broadcast %cst_13 : f32 to vector<64x1xf32>
    %47 = arith.select %45, %46, %43 : vector<64x1xi1>, vector<64x1xf32>
    %c0_14 = arith.constant 0 : index
    %c0_15 = arith.constant 0 : index
    %48 = vector.load %arg4[%c0_14, %c0_15] : memref<64x1xf32, #tpu.memory_space<vmem>>, vector<64x1xf32>
    tpu.vector_store %arg4[%c0_14, %c0_15], %47 {strides = array<i32>} : memref<64x1xf32, #tpu.memory_space<vmem>>, vector<64x1xf32>,
    return
  }
  func.func @transform_0(%arg0: i32) -> (i32, i32) {
    %c0_i32 = arith.constant 0 : i32
    %c0_i32_0 = arith.constant 0 : i32
    return %arg0, %c0_i32 : i32, i32
  }
  func.func @transform_1(%arg0: i32) -> (i32, i32) {
    %c0_i32 = arith.constant 0 : i32
    %c0_i32_0 = arith.constant 0 : i32
    return %arg0, %c0_i32 : i32, i32
  }
  func.func @transform_2(%arg0: i32) -> (i32, i32) {
    %c0_i32 = arith.constant 0 : i32
    %c0_i32_0 = arith.constant 0 : i32
    return %arg0, %c0_i32 : i32, i32
  }
  func.func @transform_3(%arg0: i32) -> (i32, i32) {
    %c0_i32 = arith.constant 0 : i32
    %c0_i32_0 = arith.constant 0 : i32
    return %arg0, %c0_i32 : i32, i32
  }
}

</mosaic_0001>

<llo_original>
// kernel: tpu_custom_call.1
$region0: #{tpu_custom_call.1}
  #allocation0 [shape = 'u32[]', space=smem, size = 0x4, offset = 0x4, fixed_abs, tag = 'smem constant byte address 0x4 - core index']
  #allocation1 [shape = 'u32[144,128]{1,0:T(1,128)}', space=vmem, size = 0x12000, scoped, tag = 'internal scratch']
  %s0 = inlined_call_operand.hbm [shape: f32[64,16], index: 0, kind: input, shape index: {}]
  %s1 = inlined_call_operand.hbm [shape: s32[64,1], index: 1, kind: input, shape index: {}]
  %s2 = inlined_call_operand.hbm [shape: f32[64,1], index: 2, kind: input, shape index: {}]
  %s3 = inlined_call_operand.hbm [shape: f32[64,1], index: 3, kind: output, shape index: {}]
  %s4 = sld [smem:[#allocation0]]
  $region34: #{tpu_custom_call.1} parent=0
    _
  %s6 = ssub.s32 1, %s4
  %s7 = scalar_select 0, %s6, %s4
  $region1: #{tpu_custom_call.1} parent=0
    #allocation2 [shape = 'u8[32768]{0}', space=vmem, size = 0x8000, scoped, tag = 'input window, operand 0, single buffered']
    #allocation3 [shape = 's32[1]{0}', space=sflag, size = 0x4, scoped, tag = 'scoped memory for tpu_custom_call.1']
    #allocation4 [shape = 's32[1]{0}', space=sflag, size = 0x4, scoped, tag = 'scoped memory for tpu_custom_call.1']
    #allocation5 [shape = 'u8[32768]{0}', space=vmem, size = 0x8000, scoped, tag = 'input window, operand 1, single buffered']
    #allocation6 [shape = 's32[1]{0}', space=sflag, size = 0x4, scoped, tag = 'scoped memory for tpu_custom_call.1']
    #allocation7 [shape = 'u8[32768]{0}', space=vmem, size = 0x8000, scoped, tag = 'input window, operand 2, single buffered']
    #allocation8 [shape = 'u8[32768]{0}', space=vmem, size = 0x8000, scoped, tag = 'output window, operand 0, single buffered']
    %8 = vsyncpa [#allocation3], 0
    %9 = vsyncpa [#allocation6], 0
    %10 = vsyncpa [#allocation4], 0
    // Predicated region
    $region2: #{tpu_custom_call.1} parent=1 // pred_check
      _
    $region3: #{tpu_custom_call.1} parent=1 // pred_check_branch
      %12 = sbr.rel (0) target = $region5
    $region4: #{tpu_custom_call.1} parent=1 // pred_region
      %s14 = ssub.s32 1024, 1024
      %15 = vsyncadd [#allocation3], %s14
      %s16 = sshll.u32 [#allocation2], 4
      %s17 = int_to_ptr.vmem [resolvable:$true] %s16
      %22 = dma.hbm_to_vmem [thread:$0]  %s0, 1024, %s17, [#allocation3], 128, 128, 8
    $region5: #{tpu_custom_call.1} parent=1 // pred_fallthru
      _
    // Predicated region
    $region6: #{tpu_custom_call.1} parent=1 // pred_check
      _
    $region7: #{tpu_custom_call.1} parent=1 // pred_check_branch
      %24 = sbr.rel (0) target = $region9
    $region8: #{tpu_custom_call.1} parent=1 // pred_region
      %s26 = ssub.s32 1024, 1024
      %27 = vsyncadd [#allocation6], %s26
      %s28 = sshll.u32 [#allocation5], 4
      %s29 = int_to_ptr.vmem [resolvable:$true] %s28
      %34 = dma.hbm_to_vmem [thread:$0]  %s1, 1024, %s29, [#allocation6], 128, 128, 8
    $region9: #{tpu_custom_call.1} parent=1 // pred_fallthru
      _
    // Predicated region
    $region10: #{tpu_custom_call.1} parent=1 // pred_check
      _
    $region11: #{tpu_custom_call.1} parent=1 // pred_check_branch
      %36 = sbr.rel (0) target = $region13
    $region12: #{tpu_custom_call.1} parent=1 // pred_region
      %s38 = ssub.s32 1024, 1024
      %39 = vsyncadd [#allocation6], %s38
      %s40 = sshll.u32 [#allocation7], 4
      %s41 = int_to_ptr.vmem [resolvable:$true] %s40
      %46 = dma.hbm_to_vmem [thread:$0]  %s2, 1024, %s41, [#allocation6], 128, 128, 8
    $region13: #{tpu_custom_call.1} parent=1 // pred_fallthru
      _
    // Predicated region
    $region14: #{tpu_custom_call.1} parent=1 // pred_check
      _
    $region15: #{tpu_custom_call.1} parent=1 // pred_check_branch
      %48 = sbr.rel (0) target = $region17
    $region16: #{tpu_custom_call.1} parent=1 // pred_region
      %49 = dma.done [#allocation3], 1024
    $region17: #{tpu_custom_call.1} parent=1 // pred_fallthru
      _
    // Predicated region
    $region18: #{tpu_custom_call.1} parent=1 // pred_check
      _
    $region19: #{tpu_custom_call.1} parent=1 // pred_check_branch
      %51 = sbr.rel (0) target = $region21
    $region20: #{tpu_custom_call.1} parent=1 // pred_region
      %52 = dma.done [#allocation6], 1024
    $region21: #{tpu_custom_call.1} parent=1 // pred_fallthru
      _
    // Predicated region
    $region22: #{tpu_custom_call.1} parent=1 // pred_check
      _
    $region23: #{tpu_custom_call.1} parent=1 // pred_check_branch
      %54 = sbr.rel (0) target = $region25
    $region24: #{tpu_custom_call.1} parent=1 // pred_region
      %55 = dma.done [#allocation6], 1024
    $region25: #{tpu_custom_call.1} parent=1 // pred_fallthru
      _
    %v56 = vld [vmem:[#allocation2] sm:$0xff]
    %v57 = vld [vmem:[#allocation2 + $0x8] sm:$0xff]
    %v58 = vld [vmem:[#allocation2 + $0x10] sm:$0xff]
    %v59 = vld [vmem:[#allocation2 + $0x18] sm:$0xff]
    %v60 = vld [vmem:[#allocation2 + $0x20] sm:$0xff]
    %v61 = vld [vmem:[#allocation2 + $0x28] sm:$0xff]
    %v62 = vld [vmem:[#allocation2 + $0x30] sm:$0xff]
    %v63 = vld [vmem:[#allocation2 + $0x38] sm:$0xff]
    %v64 = vld [vmem:[#allocation5] sm:$0xff]
    %v65 = vld [vmem:[#allocation5 + $0x8] sm:$0xff]
    %v66 = vld [vmem:[#allocation5 + $0x10] sm:$0xff]
    %v67 = vld [vmem:[#allocation5 + $0x18] sm:$0xff]
    %v68 = vld [vmem:[#allocation5 + $0x20] sm:$0xff]
    %v69 = vld [vmem:[#allocation5 + $0x28] sm:$0xff]
    %v70 = vld [vmem:[#allocation5 + $0x30] sm:$0xff]
    %v71 = vld [vmem:[#allocation5 + $0x38] sm:$0xff]
    %v72 = vld [vmem:[#allocation7] sm:$0xff]
    %v73 = vld [vmem:[#allocation7 + $0x8] sm:$0xff]
    %v74 = vld [vmem:[#allocation7 + $0x10] sm:$0xff]
    %v75 = vld [vmem:[#allocation7 + $0x18] sm:$0xff]
    %v76 = vld [vmem:[#allocation7 + $0x20] sm:$0xff]
    %v77 = vld [vmem:[#allocation7 + $0x28] sm:$0xff]
    %v78 = vld [vmem:[#allocation7 + $0x30] sm:$0xff]
    %v79 = vld [vmem:[#allocation7 + $0x38] sm:$0xff]
    %vm80 = vcmp.eq.s32.totalorder %v64, 1
    %vm81 = vcmp.eq.s32.totalorder %v65, 1
    %vm82 = vcmp.eq.s32.totalorder %v66, 1
    %vm83 = vcmp.eq.s32.totalorder %v67, 1
    %vm84 = vcmp.eq.s32.totalorder %v68, 1
    %vm85 = vcmp.eq.s32.totalorder %v69, 1
    %vm86 = vcmp.eq.s32.totalorder %v70, 1
    %vm87 = vcmp.eq.s32.totalorder %v71, 1
    %v88 = vsel %vm80, 1.0, %v72
    %v89 = vsel %vm81, 1.0, %v73
    %v90 = vsel %vm82, 1.0, %v74
    %v91 = vsel %vm83, 1.0, %v75
    %v92 = vsel %vm84, 1.0, %v76
    %v93 = vsel %vm85, 1.0, %v77
    %v94 = vsel %vm86, 1.0, %v78
    %v95 = vsel %vm87, 1.0, %v79
    %vm96 = vcmp.eq.s32.totalorder %v64, 2
    %vm97 = vcmp.eq.s32.totalorder %v65, 2
    %vm98 = vcmp.eq.s32.totalorder %v66, 2
    %vm99 = vcmp.eq.s32.totalorder %v67, 2
    %vm100 = vcmp.eq.s32.totalorder %v68, 2
    %vm101 = vcmp.eq.s32.totalorder %v69, 2
    %vm102 = vcmp.eq.s32.totalorder %v70, 2
    %vm103 = vcmp.eq.s32.totalorder %v71, 2
    %v104 = vsel %vm96, 3.0, %v88
    %v105 = vsel %vm97, 3.0, %v89
    %v106 = vsel %vm98, 3.0, %v90
    %v107 = vsel %vm99, 3.0, %v91
    %v108 = vsel %vm100, 3.0, %v92
    %v109 = vsel %vm101, 3.0, %v93
    %v110 = vsel %vm102, 3.0, %v94
    %v111 = vsel %vm103, 3.0, %v95
    %vm112 = vcmp.eq.s32.totalorder %v64, 3
    %vm113 = vcmp.eq.s32.totalorder %v65, 3
    %vm114 = vcmp.eq.s32.totalorder %v66, 3
    %vm115 = vcmp.eq.s32.totalorder %v67, 3
    %vm116 = vcmp.eq.s32.totalorder %v68, 3
    %vm117 = vcmp.eq.s32.totalorder %v69, 3
    %vm118 = vcmp.eq.s32.totalorder %v70, 3
    %vm119 = vcmp.eq.s32.totalorder %v71, 3
    %v120 = vsel %vm112, 1.0, %v104
    %v121 = vsel %vm113, 1.0, %v105
    %v122 = vsel %vm114, 1.0, %v106
    %v123 = vsel %vm115, 1.0, %v107
    %v124 = vsel %vm116, 1.0, %v108
    %v125 = vsel %vm117, 1.0, %v109
    %v126 = vsel %vm118, 1.0, %v110
    %v127 = vsel %vm119, 1.0, %v111
    %vm128 = vcmp.eq.s32.totalorder %v64, 4
    %vm129 = vcmp.eq.s32.totalorder %v65, 4
    %vm130 = vcmp.eq.s32.totalorder %v66, 4
    %vm131 = vcmp.eq.s32.totalorder %v67, 4
    %vm132 = vcmp.eq.s32.totalorder %v68, 4
    %vm133 = vcmp.eq.s32.totalorder %v69, 4
    %vm134 = vcmp.eq.s32.totalorder %v70, 4
    %vm135 = vcmp.eq.s32.totalorder %v71, 4
    %v136 = vsel %vm128, 3.0, %v120
    %v137 = vsel %vm129, 3.0, %v121
    %v138 = vsel %vm130, 3.0, %v122
    %v139 = vsel %vm131, 3.0, %v123
    %v140 = vsel %vm132, 3.0, %v124
    %v141 = vsel %vm133, 3.0, %v125
    %v142 = vsel %vm134, 3.0, %v126
    %v143 = vsel %vm135, 3.0, %v127
    %vm144 = vcmp.ge.s32.totalorder %v64, 5
    %vm145 = vcmp.ge.s32.totalorder %v65, 5
    %vm146 = vcmp.ge.s32.totalorder %v66, 5
    %vm147 = vcmp.ge.s32.totalorder %v67, 5
    %vm148 = vcmp.ge.s32.totalorder %v68, 5
    %vm149 = vcmp.ge.s32.totalorder %v69, 5
    %vm150 = vcmp.ge.s32.totalorder %v70, 5
    %vm151 = vcmp.ge.s32.totalorder %v71, 5
    %vm152 = vcmp.le.s32.totalorder %v64, 9
    %vm153 = vcmp.le.s32.totalorder %v65, 9
    %vm154 = vcmp.le.s32.totalorder %v66, 9
    %vm155 = vcmp.le.s32.totalorder %v67, 9
    %vm156 = vcmp.le.s32.totalorder %v68, 9
    %vm157 = vcmp.le.s32.totalorder %v69, 9
    %vm158 = vcmp.le.s32.totalorder %v70, 9
    %vm159 = vcmp.le.s32.totalorder %v71, 9
    %vm160 = vmand %vm144, %vm152
    %vm161 = vmand %vm145, %vm153
    %vm162 = vmand %vm146, %vm154
    %vm163 = vmand %vm147, %vm155
    %vm164 = vmand %vm148, %vm156
    %vm165 = vmand %vm149, %vm157
    %vm166 = vmand %vm150, %vm158
    %vm167 = vmand %vm151, %vm159
    %v168 = vsel %vm160, 5.0, %v136
    %v169 = vsel %vm161, 5.0, %v137
    %v170 = vsel %vm162, 5.0, %v138
    %v171 = vsel %vm163, 5.0, %v139
    %v172 = vsel %vm164, 5.0, %v140
    %v173 = vsel %vm165, 5.0, %v141
    %v174 = vsel %vm166, 5.0, %v142
    %v175 = vsel %vm167, 5.0, %v143
    %vm176 = vcmask 130048
    %v177 = vsel %vm176, %v56, -inf
    %178 = vmax.xlane.f32.xlu0 %v177
    %v179 = vpop.xlane.xlu0 %178
    %v180 = vsel %vm176, %v57, -inf
    %181 = vmax.xlane.f32.xlu0 %v180
    %v182 = vpop.xlane.xlu0 %181
    %v183 = vsel %vm176, %v58, -inf
    %184 = vmax.xlane.f32.xlu0 %v183
    %v185 = vpop.xlane.xlu0 %184
    %v186 = vsel %vm176, %v59, -inf
    %187 = vmax.xlane.f32.xlu0 %v186
    %v188 = vpop.xlane.xlu0 %187
    %v189 = vsel %vm176, %v60, -inf
    %190 = vmax.xlane.f32.xlu0 %v189
    %v191 = vpop.xlane.xlu0 %190
    %v192 = vsel %vm176, %v61, -inf
    %193 = vmax.xlane.f32.xlu0 %v192
    %v194 = vpop.xlane.xlu0 %193
    %v195 = vsel %vm176, %v62, -inf
    %196 = vmax.xlane.f32.xlu0 %v195
    %v197 = vpop.xlane.xlu0 %196
    %v198 = vsel %vm176, %v63, -inf
    %199 = vmax.xlane.f32.xlu0 %v198
    %v200 = vpop.xlane.xlu0 %199
    %v201 = vsub.f32 %v56, %v179
    %v202 = vsub.f32 %v57, %v182
    %v203 = vsub.f32 %v58, %v185
    %v204 = vsub.f32 %v59, %v188
    %v205 = vsub.f32 %v60, %v191
    %v206 = vsub.f32 %v61, %v194
    %v207 = vsub.f32 %v62, %v197
    %v208 = vsub.f32 %v63, %v200
    %v209 = vmul.f32 %v201, 1.442695
    %v210 = vpow.pop %v209
    %v211 = vmul.f32 %v202, 1.442695
    %v212 = vpow.pop %v211
    %v213 = vmul.f32 %v203, 1.442695
    %v214 = vpow.pop %v213
    %v215 = vmul.f32 %v204, 1.442695
    %v216 = vpow.pop %v215
    %v217 = vmul.f32 %v205, 1.442695
    %v218 = vpow.pop %v217
    %v219 = vmul.f32 %v206, 1.442695
    %v220 = vpow.pop %v219
    %v221 = vmul.f32 %v207, 1.442695
    %v222 = vpow.pop %v221
    %v223 = vmul.f32 %v208, 1.442695
    %v224 = vpow.pop %v223
    %v225 = vsel %vm176, %v210, 0.0
    %226 = vadd.xlane.f32.xlu0 %v225
    %v227 = vpop.xlane.xlu0 %226
    %v228 = vsel %vm176, %v212, 0.0
    %229 = vadd.xlane.f32.xlu0 %v228
    %v230 = vpop.xlane.xlu0 %229
    %v231 = vsel %vm176, %v214, 0.0
    %232 = vadd.xlane.f32.xlu0 %v231
    %v233 = vpop.xlane.xlu0 %232
    %v234 = vsel %vm176, %v216, 0.0
    %235 = vadd.xlane.f32.xlu0 %v234
    %v236 = vpop.xlane.xlu0 %235
    %v237 = vsel %vm176, %v218, 0.0
    %238 = vadd.xlane.f32.xlu0 %v237
    %v239 = vpop.xlane.xlu0 %238
    %v240 = vsel %vm176, %v220, 0.0
    %241 = vadd.xlane.f32.xlu0 %v240
    %v242 = vpop.xlane.xlu0 %241
    %v243 = vsel %vm176, %v222, 0.0
    %244 = vadd.xlane.f32.xlu0 %v243
    %v245 = vpop.xlane.xlu0 %244
    %v246 = vsel %vm176, %v224, 0.0
    %247 = vadd.xlane.f32.xlu0 %v246
    %v248 = vpop.xlane.xlu0 %247
    %v249 = vlaneseq
    %v250 = vand.u32 %v249, 127
    %251 = vset.pattern.permute.xlu0 0
    %252 = vperm.xlu0 %251, %v64
    %v253 = vpop.permute.xlu0 %252
    %254 = vset.pattern.permute.xlu0 0
    %255 = vperm.xlu0 %254, %v65
    %v256 = vpop.permute.xlu0 %255
    %257 = vset.pattern.permute.xlu0 0
    %258 = vperm.xlu0 %257, %v66
    %v259 = vpop.permute.xlu0 %258
    %260 = vset.pattern.permute.xlu0 0
    %261 = vperm.xlu0 %260, %v67
    %v262 = vpop.permute.xlu0 %261
    %263 = vset.pattern.permute.xlu0 0
    %264 = vperm.xlu0 %263, %v68
    %v265 = vpop.permute.xlu0 %264
    %266 = vset.pattern.permute.xlu0 0
    %267 = vperm.xlu0 %266, %v69
    %v268 = vpop.permute.xlu0 %267
    %269 = vset.pattern.permute.xlu0 0
    %270 = vperm.xlu0 %269, %v70
    %v271 = vpop.permute.xlu0 %270
    %272 = vset.pattern.permute.xlu0 0
    %273 = vperm.xlu0 %272, %v71
    %v274 = vpop.permute.xlu0 %273
    %vm275 = vcmp.eq.s32.totalorder %v250, %v253
    %vm276 = vcmp.eq.s32.totalorder %v250, %v256
    %vm277 = vcmp.eq.s32.totalorder %v250, %v259
    %vm278 = vcmp.eq.s32.totalorder %v250, %v262
    %vm279 = vcmp.eq.s32.totalorder %v250, %v265
    %vm280 = vcmp.eq.s32.totalorder %v250, %v268
    %vm281 = vcmp.eq.s32.totalorder %v250, %v271
    %vm282 = vcmp.eq.s32.totalorder %v250, %v274
    %v283 = vsel %vm275, %v201, 0.0
    %v284 = vsel %vm276, %v202, 0.0
    %v285 = vsel %vm277, %v203, 0.0
    %v286 = vsel %vm278, %v204, 0.0
    %v287 = vsel %vm279, %v205, 0.0
    %v288 = vsel %vm280, %v206, 0.0
    %v289 = vsel %vm281, %v207, 0.0
    %v290 = vsel %vm282, %v208, 0.0
    %v291 = vsel %vm176, %v283, 0.0
    %292 = vadd.xlane.f32.xlu0 %v291
    %v293 = vpop.xlane.xlu0 %292
    %v294 = vsel %vm176, %v284, 0.0
    %295 = vadd.xlane.f32.xlu0 %v294
    %v296 = vpop.xlane.xlu0 %295
    %v297 = vsel %vm176, %v285, 0.0
    %298 = vadd.xlane.f32.xlu0 %v297
    %v299 = vpop.xlane.xlu0 %298
    %v300 = vsel %vm176, %v286, 0.0
    %301 = vadd.xlane.f32.xlu0 %v300
    %v302 = vpop.xlane.xlu0 %301
    %v303 = vsel %vm176, %v287, 0.0
    %304 = vadd.xlane.f32.xlu0 %v303
    %v305 = vpop.xlane.xlu0 %304
    %v306 = vsel %vm176, %v288, 0.0
    %307 = vadd.xlane.f32.xlu0 %v306
    %v308 = vpop.xlane.xlu0 %307
    %v309 = vsel %vm176, %v289, 0.0
    %310 = vadd.xlane.f32.xlu0 %v309
    %v311 = vpop.xlane.xlu0 %310
    %v312 = vsel %vm176, %v290, 0.0
    %313 = vadd.xlane.f32.xlu0 %v312
    %v314 = vpop.xlane.xlu0 %313
    %v315 = vlog2.pop %v227
    %v316 = vmul.f32 %v315, 0.6931472
    %v317 = vlog2.pop %v230
    %v318 = vmul.f32 %v317, 0.6931472
    %v319 = vlog2.pop %v233
    %v320 = vmul.f32 %v319, 0.6931472
    %v321 = vlog2.pop %v236
    %v322 = vmul.f32 %v321, 0.6931472
    %v323 = vlog2.pop %v239
    %v324 = vmul.f32 %v323, 0.6931472
    %v325 = vlog2.pop %v242
    %v326 = vmul.f32 %v325, 0.6931472
    %v327 = vlog2.pop %v245
    %v328 = vmul.f32 %v327, 0.6931472
    %v329 = vlog2.pop %v248
    %v330 = vmul.f32 %v329, 0.6931472
    %v331 = vsub.f32 %v316, %v293
    %v332 = vsub.f32 %v318, %v296
    %v333 = vsub.f32 %v320, %v299
    %v334 = vsub.f32 %v322, %v302
    %v335 = vsub.f32 %v324, %v305
    %v336 = vsub.f32 %v326, %v308
    %v337 = vsub.f32 %v328, %v311
    %v338 = vsub.f32 %v330, %v314
    %v339 = vmul.f32 %v331, %v168
    %v340 = vmul.f32 %v332, %v169
    %v341 = vmul.f32 %v333, %v170
    %v342 = vmul.f32 %v334, %v171
    %v343 = vmul.f32 %v335, %v172
    %v344 = vmul.f32 %v336, %v173
    %v345 = vmul.f32 %v337, %v174
    %v346 = vmul.f32 %v338, %v175
    %vm347 = vcmp.eq.s32.totalorder %v64, 4294967196
    %vm348 = vcmp.eq.s32.totalorder %v65, 4294967196
    %vm349 = vcmp.eq.s32.totalorder %v66, 4294967196
    %vm350 = vcmp.eq.s32.totalorder %v67, 4294967196
    %vm351 = vcmp.eq.s32.totalorder %v68, 4294967196
    %vm352 = vcmp.eq.s32.totalorder %v69, 4294967196
    %vm353 = vcmp.eq.s32.totalorder %v70, 4294967196
    %vm354 = vcmp.eq.s32.totalorder %v71, 4294967196
    %v355 = vsel %vm347, 0.0, %v339
    %v356 = vsel %vm348, 0.0, %v340
    %v357 = vsel %vm349, 0.0, %v341
    %v358 = vsel %vm350, 0.0, %v342
    %v359 = vsel %vm351, 0.0, %v343
    %v360 = vsel %vm352, 0.0, %v344
    %v361 = vsel %vm353, 0.0, %v345
    %v362 = vsel %vm354, 0.0, %v346
    %vm363 = vcmask 7168
    %364 = vst.msk [vmem:[#allocation8] sm:$0xff] %vm363, %v355
    %365 = vst.msk [vmem:[#allocation8 + $0x8] sm:$0xff] %vm363, %v356
    %366 = vst.msk [vmem:[#allocation8 + $0x10] sm:$0xff] %vm363, %v357
    %367 = vst.msk [vmem:[#allocation8 + $0x18] sm:$0xff] %vm363, %v358
    %368 = vst.msk [vmem:[#allocation8 + $0x20] sm:$0xff] %vm363, %v359
    %369 = vst.msk [vmem:[#allocation8 + $0x28] sm:$0xff] %vm363, %v360
    %370 = vst.msk [vmem:[#allocation8 + $0x30] sm:$0xff] %vm363, %v361
    %371 = vst.msk [vmem:[#allocation8 + $0x38] sm:$0xff] %vm363, %v362
    // Predicated region
    $region26: #{tpu_custom_call.1} parent=1 // pred_check
      _
    $region27: #{tpu_custom_call.1} parent=1 // pred_check_branch
      %373 = sbr.rel (0) target = $region29
    $region28: #{tpu_custom_call.1} parent=1 // pred_region
      %s375 = ssub.s32 1024, 1024
      %376 = vsyncadd [#allocation4], %s375
      %s377 = sshll.u32 [#allocation8], 4
      %s378 = int_to_ptr.vmem [resolvable:$true] %s377
      %383 = dma.vmem_to_hbm [thread:$0]  %s378, 1024, %s3, [#allocation4], 128, 128, 8
    $region29: #{tpu_custom_call.1} parent=1 // pred_fallthru
      _
    // Predicated region
    $region30: #{tpu_custom_call.1} parent=1 // pred_check
      _
    $region31: #{tpu_custom_call.1} parent=1 // pred_check_branch
      %385 = sbr.rel (0) target = $region33
    $region32: #{tpu_custom_call.1} parent=1 // pred_region
      %386 = dma.done [#allocation4], 1024
    $region33: #{tpu_custom_call.1} parent=1 // pred_fallthru
      _
    %387 = vsyncpa [#allocation3], 1
    %388 = vsyncpa [#allocation6], 1
    %389 = vsyncpa [#allocation4], 1

</llo_original>
